<compile_context>
chip_gen: v6e
topology: v6e:2x2x1
jax: 0.10.0
libtpu: 0.0.40
codegen_flags: <defaults>
</compile_context>

<pallas_src>
import functools

import jax
import jax.numpy as jnp
from jax import lax
from jax.experimental import pallas as pl
from jax.experimental.pallas import tpu as pltpu


def _si_rmse_kernel(z_ref, y_ref, o_ref, s1_ref, s2_ref, *,
                    eps, use_log, n, tn, acc_w, needs_mask):
    k = pl.program_id(1)

    @pl.when(k == 0)
    def _():
        s1_ref[...] = jnp.zeros_like(s1_ref)
        s2_ref[...] = jnp.zeros_like(s2_ref)

    tb = s1_ref.shape[0]
    n_chunks = tn // acc_w

    if needs_mask:
        # Hoisted out of the chunk loop (JAX does not CSE broadcast_in_dim).
        lane_ids = lax.broadcasted_iota(jnp.int32, (tb, acc_w), 1)
        col0 = k * tn  # first global column covered by this tile

    def chunk(j, carry):
        s1, s2 = carry
        start = pl.multiple_of(j * acc_w, 128)
        zc = z_ref[:, pl.ds(start, acc_w)].astype(jnp.float32)
        yc = y_ref[:, pl.ds(start, acc_w)].astype(jnp.float32)
        if needs_mask:
            # Columns >= n are stale VMEM from the partial edge block; force
            # them to 1.0 so g == 0 exactly in both modes.
            valid = lane_ids < (n - col0 - start)
            zc = jnp.where(valid, zc, 1.0)
            yc = jnp.where(valid, yc, 1.0)
        if use_log:
            # one log per element instead of two (EUP relief)
            g = jnp.log((zc + eps) / (yc + eps))
        else:
            g = zc - yc
        return s1 + g, s2 + g * g

    s1, s2 = lax.fori_loop(0, n_chunks, chunk, (s1_ref[...], s2_ref[...]))
    s1_ref[...] = s1
    s2_ref[...] = s2

    @pl.when(k == pl.num_programs(1) - 1)
    def _():
        n_f = jnp.float32(n)
        t1 = jnp.sum(s1_ref[...], axis=1, keepdims=True) / n_f   # (TB, 1)
        t2 = jnp.sum(s2_ref[...], axis=1, keepdims=True) / n_f   # (TB, 1)
        var = jnp.maximum(t2 - t1 * t1, 0.0)   # guard sqrt(-tiny) -> NaN
        o_ref[...] = jnp.sqrt(var)


_TILE_BYTES = 4 * 1024 * 1024  # target bytes per (TB, TN) input tile


def _pick_tiles(b, n, esz):
    """Return (TB, TN, ACC_W) for the (B, N) layout; no HBM padding needed."""
    tb = 8 if b >= 8 else b          # b < 8: full-dim block; b >= 8: partial edge ok
    if n < 128:
        return tb, n, n              # full-dim lane block, single chunk
    tn_max = max(128, (_TILE_BYTES // (tb * esz)) // 128 * 128)
    tn = min(tn_max, (n // 128) * 128)
    acc_w = 512 if tn % 512 == 0 else 128
    return tb, tn, acc_w


def scale_invariant_rmse_loss(z, y, *, use_log=True, reduction="mean", eps=1e-8):
    if reduction not in ("mean", "sum", "none"):
        raise ValueError('reduction must be "mean", "sum" or "none"')
    assert z.shape == y.shape
    b = z.shape[0]
    n = 1
    for d in z.shape[1:]:
        n *= d

    # Flatten to (B, N); keep original dtypes (cast happens inside the kernel).
    z2 = z.reshape(b, n)
    y2 = y.reshape(b, n)

    esz = max(jnp.dtype(z.dtype).itemsize, jnp.dtype(y.dtype).itemsize)
    tb, tn, acc_w = _pick_tiles(b, n, esz)
    grid = (pl.cdiv(b, tb), pl.cdiv(n, tn))
    needs_mask = (n % tn) != 0

    kernel = functools.partial(
        _si_rmse_kernel, eps=float(eps), use_log=bool(use_log),
        n=n, tn=tn, acc_w=acc_w, needs_mask=needs_mask,
    )

    # 2 inputs x 2 pipeline buffers + 2 small f32 accumulators + margin.
    vmem_bytes = 4 * tb * tn * esz + 4 * tb * acc_w * 4 + (4 << 20)
    vmem_limit = min(max(vmem_bytes, 16 << 20), 30 << 20)

    per_sample = pl.pallas_call(
        kernel,
        out_shape=jax.ShapeDtypeStruct((b, 1), jnp.float32),
        grid_spec=pltpu.PrefetchScalarGridSpec(
            num_scalar_prefetch=0,
            grid=grid,
            in_specs=[
                pl.BlockSpec((tb, tn), lambda i, k: (i, k)),
                pl.BlockSpec((tb, tn), lambda i, k: (i, k)),
            ],
            out_specs=pl.BlockSpec((tb, 1), lambda i, k: (i, 0)),
            scratch_shapes=[
                pltpu.VMEM((tb, acc_w), jnp.float32),  # running sum(g) partials
                pltpu.VMEM((tb, acc_w), jnp.float32),  # running sum(g^2) partials
            ],
        ),
        compiler_params=pltpu.CompilerParams(
            dimension_semantics=("parallel", "arbitrary"),
            vmem_limit_bytes=int(vmem_limit),
        ),
    )(z2, y2)

    per_sample = per_sample[:, 0]  # (B,)
    if reduction == "mean":
        return jnp.mean(per_sample)
    if reduction == "sum":
        return jnp.sum(per_sample)
    return per_sample


def _reference(z, y, *, use_log=True, reduction="mean", eps=1e-8):
    z = z.astype(jnp.float32)
    y = y.astype(jnp.float32)
    g = (jnp.log(z + eps) - jnp.log(y + eps)) if use_log else (z - y)
    b = g.shape[0]
    n = 1
    for d in g.shape[1:]:
        n *= d
    gf = g.reshape(b, -1)
    per = jnp.sqrt(jnp.sum(gf**2, axis=1) / n - jnp.sum(gf, axis=1) ** 2 / n**2)
    if reduction == "mean":
        return jnp.mean(per)
    if reduction == "sum":
        return jnp.sum(per)
    return per


if __name__ == "__main__":
    key = jax.random.PRNGKey(0)
    kz, ky = jax.random.split(key)

    # Case 1: NCHW depth-like inputs, use_log=True, mean reduction.
    B, C, H, W = 2, 4, 16, 16
    z = jax.random.uniform(kz, (B, C, H, W), jnp.float32, minval=0.1, maxval=10.0)
    y = jax.random.uniform(ky, (B, C, H, W), jnp.float32, minval=0.1, maxval=10.0)
    out = jax.block_until_ready(
        scale_invariant_rmse_loss(z, y, use_log=True, reduction="mean", eps=1e-8))
    ref = jax.block_until_ready(_reference(z, y, use_log=True, eps=1e-8))
    assert jnp.allclose(out, ref, rtol=1e-5, atol=1e-6), (out, ref)

    # Case 2: N not a multiple of 128 (exercises the in-kernel ragged-tail
    # mask, no jnp.pad), use_log=False, per-sample outputs.
    kz2, ky2 = jax.random.split(ky)
    z2 = jax.random.uniform(kz2, (2, 3, 10, 10), jnp.float32, minval=0.1, maxval=10.0)
    y2 = jax.random.uniform(ky2, (2, 3, 10, 10), jnp.float32, minval=0.1, maxval=10.0)
    out2 = jax.block_until_ready(
        scale_invariant_rmse_loss(z2, y2, use_log=False, reduction="none"))
    ref2 = jax.block_until_ready(_reference(z2, y2, use_log=False, reduction="none"))
    assert jnp.allclose(out2, ref2, rtol=1e-5, atol=1e-6), (out2, ref2)

    # Case 3: bf16 inputs (narrow HBM stream, in-kernel f32 cast) and a batch
    # that is not a multiple of 8 (full-dim batch block), sum reduction.
    kz3, ky3 = jax.random.split(ky2)
    z3 = jax.random.uniform(kz3, (5, 4, 16, 16), jnp.float32,
                            minval=0.1, maxval=10.0).astype(jnp.bfloat16)
    y3 = jax.random.uniform(ky3, (5, 4, 16, 16), jnp.float32,
                            minval=0.1, maxval=10.0).astype(jnp.bfloat16)
    out3 = jax.block_until_ready(
        scale_invariant_rmse_loss(z3, y3, use_log=True, reduction="sum"))
    ref3 = jax.block_until_ready(_reference(z3, y3, use_log=True, reduction="sum"))
    assert jnp.allclose(out3, ref3, rtol=1e-4, atol=1e-5), (out3, ref3)

    print("KERNEL_OK")
</pallas_src>

<mosaic_0001>
module attributes {stable_mosaic.version = 11 : i64} {
  func.func @_si_rmse_kernel(%arg0: i32, %arg1: i32, %arg2: memref<2x1024xf32, #tpu.memory_space<vmem>>, %arg3: memref<2x1024xf32, #tpu.memory_space<vmem>>, %arg4: memref<2x1xf32, #tpu.memory_space<vmem>>, %arg5: memref<2x512xf32, #tpu.memory_space<vmem>>, %arg6: memref<2x512xf32, #tpu.memory_space<vmem>>) attributes {dimension_semantics = [#tpu.dimension_semantics<parallel>, #tpu.dimension_semantics<arbitrary>], iteration_bounds = array<i64: 1, 1>, scalar_prefetch = 0 : i64, scratch_operands = 2 : i64, tpu.core_type = #tpu.core_type<tc>, window_params = [{transform_indices = @transform_0, window_bounds = array<i64: 2, 1024>}, {transform_indices = @transform_1, window_bounds = array<i64: 2, 1024>}, {transform_indices = @transform_2, window_bounds = array<i64: 2, 1>}]} {
    %c0_i32 = arith.constant 0 : i32
    %0 = arith.cmpi eq, %arg1, %c0_i32 : i32
    %1 = arith.extui %0 : i1 to i32
    %c0_i32_0 = arith.constant 0 : i32
    %2 = arith.cmpi ne, %1, %c0_i32_0 : i32
    scf.if %2 {
      %cst = arith.constant 0.000000e+00 : f32
      %12 = vector.broadcast %cst : f32 to vector<2x512xf32>
      %c0_12 = arith.constant 0 : index
      %c0_13 = arith.constant 0 : index
      %13 = vector.load %arg5[%c0_12, %c0_13] : memref<2x512xf32, #tpu.memory_space<vmem>>, vector<2x512xf32>
      tpu.vector_store %arg5[%c0_12, %c0_13], %12 {strides = array<i32>} : memref<2x512xf32, #tpu.memory_space<vmem>>, vector<2x512xf32>,
      %cst_14 = arith.constant 0.000000e+00 : f32
      %14 = vector.broadcast %cst_14 : f32 to vector<2x512xf32>
      %c0_15 = arith.constant 0 : index
      %c0_16 = arith.constant 0 : index
      %15 = vector.load %arg6[%c0_15, %c0_16] : memref<2x512xf32, #tpu.memory_space<vmem>>, vector<2x512xf32>
      tpu.vector_store %arg6[%c0_15, %c0_16], %14 {strides = array<i32>} : memref<2x512xf32, #tpu.memory_space<vmem>>, vector<2x512xf32>,
    } else {
    }
    %c0 = arith.constant 0 : index
    %c0_1 = arith.constant 0 : index
    %3 = vector.load %arg5[%c0, %c0_1] : memref<2x512xf32, #tpu.memory_space<vmem>>, vector<2x512xf32>
    %c0_2 = arith.constant 0 : index
    %c0_3 = arith.constant 0 : index
    %4 = vector.load %arg6[%c0_2, %c0_3] : memref<2x512xf32, #tpu.memory_space<vmem>>, vector<2x512xf32>
    %c0_i32_4 = arith.constant 0 : i32
    %c2_i32 = arith.constant 2 : i32
    %5 = arith.addi %c0_i32_4, %c2_i32 : i32
    %c1_i32 = arith.constant 1 : i32
    %6:2 = scf.for %arg7 = %c0_i32_4 to %5 step %c1_i32 iter_args(%arg8 = %3, %arg9 = %4) -> (vector<2x512xf32>, vector<2x512xf32>)  : i32 {
      %c512_i32 = arith.constant 512 : i32
      %12 = arith.muli %arg7, %c512_i32 : i32
      %13 = tpu.assume_multiple %12, 128 : i32
      %c0_12 = arith.constant 0 : index
      %14 = arith.index_cast %13 : i32 to index
      %15 = vector.load %arg2[%c0_12, %14] : memref<2x1024xf32, #tpu.memory_space<vmem>>, vector<2x512xf32>
      %c0_13 = arith.constant 0 : index
      %16 = arith.index_cast %13 : i32 to index
      %17 = vector.load %arg3[%c0_13, %16] : memref<2x1024xf32, #tpu.memory_space<vmem>>, vector<2x512xf32>
      %cst = arith.constant 9.99999993E-9 : f32
      %18 = vector.broadcast %cst : f32 to vector<2x512xf32>
      %19 = arith.addf %15, %18 : vector<2x512xf32>
      %cst_14 = arith.constant 9.99999993E-9 : f32
      %20 = vector.broadcast %cst_14 : f32 to vector<2x512xf32>
      %21 = arith.addf %17, %20 : vector<2x512xf32>
      %22 = arith.divf %19, %21 : vector<2x512xf32>
      %23 = math.log %22 : vector<2x512xf32>
      %24 = arith.addf %arg8, %23 : vector<2x512xf32>
      %25 = arith.mulf %23, %23 : vector<2x512xf32>
      %26 = arith.addf %arg9, %25 : vector<2x512xf32>
      scf.yield %24, %26 : vector<2x512xf32>, vector<2x512xf32>
    }
    %c2_i32_5 = arith.constant 2 : i32
    %c0_6 = arith.constant 0 : index
    %c0_7 = arith.constant 0 : index
    %7 = vector.load %arg5[%c0_6, %c0_7] : memref<2x512xf32, #tpu.memory_space<vmem>>, vector<2x512xf32>
    tpu.vector_store %arg5[%c0_6, %c0_7], %6#0 {strides = array<i32>} : memref<2x512xf32, #tpu.memory_space<vmem>>, vector<2x512xf32>,
    %c0_8 = arith.constant 0 : index
    %c0_9 = arith.constant 0 : index
    %8 = vector.load %arg6[%c0_8, %c0_9] : memref<2x512xf32, #tpu.memory_space<vmem>>, vector<2x512xf32>
    tpu.vector_store %arg6[%c0_8, %c0_9], %6#1 {strides = array<i32>} : memref<2x512xf32, #tpu.memory_space<vmem>>, vector<2x512xf32>,
    %c0_i32_10 = arith.constant 0 : i32
    %9 = arith.cmpi eq, %arg1, %c0_i32_10 : i32
    %10 = arith.extui %9 : i1 to i32
    %c0_i32_11 = arith.constant 0 : i32
    %11 = arith.cmpi ne, %10, %c0_i32_11 : i32
    scf.if %11 {
      %c0_12 = arith.constant 0 : index
      %c0_13 = arith.constant 0 : index
      %12 = vector.load %arg5[%c0_12, %c0_13] : memref<2x512xf32, #tpu.memory_space<vmem>>, vector<2x512xf32>
      %cst = arith.constant dense<0.000000e+00> : vector<2xf32>
      %13 = vector.multi_reduction <add>, %12, %cst [1] : vector<2x512xf32> to vector<2xf32>
      %14 = vector.shape_cast %13 : vector<2xf32> to vector<2x1xf32>
      %cst_14 = arith.constant 1.024000e+03 : f32
      %15 = vector.broadcast %cst_14 : f32 to vector<2x1xf32>
      %16 = arith.divf %14, %15 : vector<2x1xf32>
      %c0_15 = arith.constant 0 : index
      %c0_16 = arith.constant 0 : index
      %17 = vector.load %arg6[%c0_15, %c0_16] : memref<2x512xf32, #tpu.memory_space<vmem>>, vector<2x512xf32>
      %cst_17 = arith.constant dense<0.000000e+00> : vector<2xf32>
      %18 = vector.multi_reduction <add>, %17, %cst_17 [1] : vector<2x512xf32> to vector<2xf32>
      %19 = vector.shape_cast %18 : vector<2xf32> to vector<2x1xf32>
      %cst_18 = arith.constant 1.024000e+03 : f32
      %20 = vector.broadcast %cst_18 : f32 to vector<2x1xf32>
      %21 = arith.divf %19, %20 : vector<2x1xf32>
      %22 = arith.mulf %16, %16 : vector<2x1xf32>
      %23 = arith.subf %21, %22 : vector<2x1xf32>
      %cst_19 = arith.constant 0.000000e+00 : f32
      %24 = vector.broadcast %cst_19 : f32 to vector<2x1xf32>
      %25 = arith.maximumf %23, %24 : vector<2x1xf32>
      %26 = math.sqrt %25 : vector<2x1xf32>
      %c0_20 = arith.constant 0 : index
      %c0_21 = arith.constant 0 : index
      %27 = vector.load %arg4[%c0_20, %c0_21] : memref<2x1xf32, #tpu.memory_space<vmem>>, vector<2x1xf32>
      tpu.vector_store %arg4[%c0_20, %c0_21], %26 {strides = array<i32>} : memref<2x1xf32, #tpu.memory_space<vmem>>, vector<2x1xf32>,
    } else {
    }
    return
  }
  func.func @transform_0(%arg0: i32, %arg1: i32) -> (i32, i32) {
    %c0_i32 = arith.constant 0 : i32
    return %arg0, %arg1 : i32, i32
  }
  func.func @transform_1(%arg0: i32, %arg1: i32) -> (i32, i32) {
    %c0_i32 = arith.constant 0 : i32
    return %arg0, %arg1 : i32, i32
  }
  func.func @transform_2(%arg0: i32, %arg1: i32) -> (i32, i32) {
    %c0_i32 = arith.constant 0 : i32
    %c0_i32_0 = arith.constant 0 : i32
    return %arg0, %c0_i32 : i32, i32
  }
}

</mosaic_0001>

<llo_original>
// kernel: tpu_custom_call.1
$region0: #{tpu_custom_call.1}
  #allocation0 [shape = 'u32[]', space=smem, size = 0x4, offset = 0x4, fixed_abs, tag = 'smem constant byte address 0x4 - core index']
  #allocation1 [shape = 'u32[144,128]{1,0:T(1,128)}', space=vmem, size = 0x12000, scoped, tag = 'internal scratch']
  #allocation2 [shape = 'f32[2,512]{1,0:T(2,128)}', space=vmem, size = 0x1000, scoped, tag = 'scratch operand']
  #allocation3 [shape = 'f32[2,512]{1,0:T(2,128)}', space=vmem, size = 0x1000, scoped, tag = 'scratch operand']
  %s0 = inlined_call_operand.hbm [shape: f32[2,1024], index: 0, kind: input, shape index: {}]
  %s1 = inlined_call_operand.hbm [shape: f32[2,1024], index: 1, kind: input, shape index: {}]
  %s2 = inlined_call_operand.vmem [shape: f32[2,1], index: 2, kind: output, shape index: {}]
  %s3 = sld [smem:[#allocation0]]
  $region41: #{tpu_custom_call.1} parent=0
    _
  %s5 = ssub.s32 1, %s3
  %s6 = scalar_select 0, %s5, %s3
  $region1: #{tpu_custom_call.1} parent=0
    #allocation4 [shape = 'u8[8192]{0}', space=vmem, size = 0x2000, scoped, tag = 'input window, operand 0, single buffered']
    #allocation5 [shape = 's32[1]{0}', space=sflag, size = 0x4, scoped, tag = 'scoped memory for tpu_custom_call.1']
    #allocation6 [shape = 'u8[8192]{0}', space=vmem, size = 0x2000, scoped, tag = 'input window, operand 1, single buffered']
    #allocation7 [shape = 's32[1]{0}', space=sflag, size = 0x4, scoped, tag = 'scoped memory for tpu_custom_call.1']
    %7 = vsyncpa [#allocation5], 0
    %8 = vsyncpa [#allocation7], 0
    // Predicated region
    $region2: #{tpu_custom_call.1} parent=1 // pred_check
      _
    $region3: #{tpu_custom_call.1} parent=1 // pred_check_branch
      %10 = sbr.rel (0) target = $region5
    $region4: #{tpu_custom_call.1} parent=1 // pred_region
      %s12 = ssub.s32 256, 256
      %13 = vsyncadd [#allocation5], %s12
      %s15 = sshll.u32 [#allocation4], 4
      %s16 = int_to_ptr.vmem [resolvable:$true] %s15
      %18 = dma.hbm_to_vmem [thread:$0]  %s0, 256, %s16, [#allocation5]
    $region5: #{tpu_custom_call.1} parent=1 // pred_fallthru
      _
    // Predicated region
    $region6: #{tpu_custom_call.1} parent=1 // pred_check
      _
    $region7: #{tpu_custom_call.1} parent=1 // pred_check_branch
      %20 = sbr.rel (0) target = $region9
    $region8: #{tpu_custom_call.1} parent=1 // pred_region
      %s22 = ssub.s32 256, 256
      %23 = vsyncadd [#allocation7], %s22
      %s25 = sshll.u32 [#allocation6], 4
      %s26 = int_to_ptr.vmem [resolvable:$true] %s25
      %28 = dma.hbm_to_vmem [thread:$0]  %s1, 256, %s26, [#allocation7]
    $region9: #{tpu_custom_call.1} parent=1 // pred_fallthru
      _
    // Predicated region
    $region10: #{tpu_custom_call.1} parent=1 // pred_check
      _
    $region11: #{tpu_custom_call.1} parent=1 // pred_check_branch
      %30 = sbr.rel (0) target = $region13
    $region12: #{tpu_custom_call.1} parent=1 // pred_region
      %31 = dma.done [#allocation5], 256
    $region13: #{tpu_custom_call.1} parent=1 // pred_fallthru
      _
    // Predicated region
    $region14: #{tpu_custom_call.1} parent=1 // pred_check
      _
    $region15: #{tpu_custom_call.1} parent=1 // pred_check_branch
      %33 = sbr.rel (0) target = $region17
    $region16: #{tpu_custom_call.1} parent=1 // pred_region
      %34 = dma.done [#allocation7], 256
    $region17: #{tpu_custom_call.1} parent=1 // pred_fallthru
      _
    %p35 = scmp.eq.s32.totalorder 0, 0
    // Predicated region
    $region18: #{tpu_custom_call.1} parent=1 // pred_check
      %p36 = pneg %p35
    $region19: #{tpu_custom_call.1} parent=1 // pred_check_branch
      %38 = sbr.rel (%p36) target = $region21
    $region20: #{tpu_custom_call.1} parent=1 // pred_region
      %39 = vst [vmem:[#allocation2] sm:$0xff] 0.0
      %40 = vst [vmem:[#allocation3] sm:$0xff] 0.0
    $region21: #{tpu_custom_call.1} parent=1 // pred_fallthru
      _
    %v41 = vld [vmem:[#allocation2] sm:$0xff]
    %v42 = vld [vmem:[#allocation3] sm:$0xff]
    loop: start=0, step=1, limit=2
    $region22: #{tpu_custom_call.1} parent=1 // loop_pre_header
      _
    $region23: #{tpu_custom_call.1} parent=1 // loop_header
      %s44 = sphi 0, %s48
      %p45 = scmp.ge.s32.totalorder %s44, 2
      %v49 = vphi %v41, %v66
      %v50 = vphi %v42, %v68
    $region24: #{tpu_custom_call.1} parent=1 // loop_header_branch
      %47 = sbr.rel (%p45) target = $region28
    $region25: #{tpu_custom_call.1} parent=1 // loop_body
      %s51 = smul.u32 %s44, 512
      %s52 = sshra.s32 %s51, 7
      %s53 = sand.u32 %s51, 127
      %s54 = smul.addr %s52, 2
      %s55 = scalar_lea.vmem [#allocation4], %s54
      %v56 = vld [vmem:[%s55] sm:$0xff]
      %s57 = smul.addr %s52, 2
      %s58 = scalar_lea.vmem [#allocation6], %s57
      %v59 = vld [vmem:[%s58] sm:$0xff]
      %v60 = vadd.f32 %v56, 1e-08
      %v61 = vadd.f32 %v59, 1e-08
      %v62 = vrcp.pop %v61
      %v63 = vmul.f32 %v60, %v62
      %v64 = vlog2.pop %v63
      %v65 = vmul.f32 %v64, 0.6931472
      %v66 = vadd.f32 %v49, %v65
      %v67 = vmul.f32 %v65, %v65
      %v68 = vadd.f32 %v50, %v67
    $region26: #{tpu_custom_call.1} parent=1 // loop_footer
      %s48 = sadd.s32 1, %s44
    $region27: #{tpu_custom_call.1} parent=1 // loop_footer_branch
      %43 = sbr.rel target = $region23
    $region28: #{tpu_custom_call.1} parent=1 // loop_exit
      _
    %69 = vst [vmem:[#allocation2] sm:$0xff] %v49
    %70 = vst [vmem:[#allocation3] sm:$0xff] %v50
    // Predicated region
    $region29: #{tpu_custom_call.1} parent=1 // pred_check
      %p71 = pneg %p35
    $region30: #{tpu_custom_call.1} parent=1 // pred_check_branch
      %73 = sbr.rel (%p71) target = $region32
    $region31: #{tpu_custom_call.1} parent=1 // pred_region
      %v74 = vld [vmem:[#allocation2] sm:$0xff]
      %v76 = vcombine.high %v74, %v74
      %v78 = vunpack.c.l.s4 1983009808
      %v79 = vunpack.c.0.s8 %v78
      %v80 = vlaneseq
      %v81 = vshrl.u32 %v80, 7
      %v82 = vsub.s32 %v79, %v81
      %v83 = vrot.slane %v74, %v82
      %v85 = vunpack.c.l.s4 1983009808
      %v86 = vunpack.c.0.s8 %v85
      %v87 = vlaneseq
      %v88 = vshrl.u32 %v87, 7
      %v89 = vsub.s32 %v86, %v88
      %v90 = vrot.slane %v76, %v89
      %v91 = vcombine.high %v83, %v83
      %v92 = vcombine.high %v90, %v90
      %vm97 = vcmask 1041408
      %v98 = vsel %vm97, %v83, 0.0
      %v99 = vsel %vm97, %v91, 0.0
      %v100 = vadd.f32 %v98, %v99
      %v101 = vsel %vm97, %v90, 0.0
      %v102 = vadd.f32 %v100, %v101
      %v103 = vsel %vm97, %v92, 0.0
      %v104 = vadd.f32 %v102, %v103
      %105 = vadd.xlane.f32.xlu0 %v104
      %v106 = vpop.xlane.xlu0 %105
      %v107 = vrcp.pop 1024.0
      %v108 = vmul.f32 %v106, %v107
      %v109 = vld [vmem:[#allocation3] sm:$0xff]
      %v111 = vcombine.high %v109, %v109
      %v113 = vunpack.c.l.s4 1983009808
      %v114 = vunpack.c.0.s8 %v113
      %v115 = vlaneseq
      %v116 = vshrl.u32 %v115, 7
      %v117 = vsub.s32 %v114, %v116
      %v118 = vrot.slane %v109, %v117
      %v120 = vunpack.c.l.s4 1983009808
      %v121 = vunpack.c.0.s8 %v120
      %v122 = vlaneseq
      %v123 = vshrl.u32 %v122, 7
      %v124 = vsub.s32 %v121, %v123
      %v125 = vrot.slane %v111, %v124
      %v126 = vcombine.high %v118, %v118
      %v127 = vcombine.high %v125, %v125
      %v132 = vsel %vm97, %v118, 0.0
      %v133 = vsel %vm97, %v126, 0.0
      %v134 = vadd.f32 %v132, %v133
      %v135 = vsel %vm97, %v125, 0.0
      %v136 = vadd.f32 %v134, %v135
      %v137 = vsel %vm97, %v127, 0.0
      %v138 = vadd.f32 %v136, %v137
      %139 = vadd.xlane.f32.xlu0 %v138
      %v140 = vpop.xlane.xlu0 %139
      %v141 = vmul.f32 %v140, %v107
      %v142 = vmul.f32 %v108, %v108
      %v143 = vsub.f32 %v141, %v142
      %v144 = vmax.f32 %v143, 0.0
      %v145 = vrsqrt.pop %v144
      %v146 = vmul.f32 %v144, %v145
      %vm147 = vcmp.eq.f32.partialorder %v144, inf
      %v148 = vsel %vm147, %v144, %v146
      %vm149 = vcmp.eq.f32.partialorder %v144, 0.0
      %v150 = vand.u32 %v144, 2147483648
      %v151 = vsel %vm149, %v150, %v148
      %vm152 = vcmask 1024
      %153 = vst.msk [vmem:[%s2] sm:$0x3] %vm152, %v151
    $region32: #{tpu_custom_call.1} parent=1 // pred_fallthru
      _
    // Predicated region
    $region33: #{tpu_custom_call.1} parent=1 // pred_check
      _
    $region34: #{tpu_custom_call.1} parent=1 // pred_check_branch
      %155 = sbr.rel (0) target = $region36
    $region35: #{tpu_custom_call.1} parent=1 // pred_region
      _
    $region36: #{tpu_custom_call.1} parent=1 // pred_fallthru
      _
    // Predicated region
    $region37: #{tpu_custom_call.1} parent=1 // pred_check
      _
    $region38: #{tpu_custom_call.1} parent=1 // pred_check_branch
      %157 = sbr.rel (0) target = $region40
    $region39: #{tpu_custom_call.1} parent=1 // pred_region
      _
    $region40: #{tpu_custom_call.1} parent=1 // pred_fallthru
      _
    %158 = vsyncpa [#allocation5], 1
    %159 = vsyncpa [#allocation7], 1

</llo_original>
